<compile_context>
chip_gen: v5e
topology: v5e:2x2
jax: 0.10.0
libtpu: 0.0.40
codegen_flags: <defaults>
</compile_context>

<pallas_src>
import functools
import math

import jax
import jax.numpy as jnp
from jax.experimental import pallas as pl
from jax.experimental.pallas import tpu as pltpu


# ----------------------------- kernel helpers --------------------------------


def _layernorm_f32(y, gamma, beta, eps):
    """LayerNorm over the last axis, f32 math (matches torch.nn.LayerNorm)."""
    gamma = gamma.astype(jnp.float32)
    beta = beta.astype(jnp.float32)
    mean = jnp.mean(y, axis=-1, keepdims=True)
    var = jnp.mean(jnp.square(y - mean), axis=-1, keepdims=True)
    return (y - mean) * jax.lax.rsqrt(var + eps) * gamma + beta


# ------------------------------ Pallas kernels --------------------------------


def _add_norm_kernel(*refs, eps, do_norm, do_add):
    # do_add:  refs = (x, pe, gamma, beta, out)
    # !do_add: refs = (x, gamma, beta, out)
    if do_add:
        x_ref, pe_ref, g_ref, b_ref, o_ref = refs
        y = x_ref[...].astype(jnp.float32) + pe_ref[...].astype(jnp.float32)
    else:
        x_ref, g_ref, b_ref, o_ref = refs
        y = x_ref[...].astype(jnp.float32)
    if do_norm:
        y = _layernorm_f32(y, g_ref[...], b_ref[...], eps)
    o_ref[...] = y.astype(o_ref.dtype)


def _encoder_layer_kernel(
    x_ref,                      # (S, d_model)           activations (one batch)
    wqkv_ref, bqkv_ref,         # (d_model, H*(2dk+dv)), (1, H*(2dk+dv))
    wo_ref, bo_ref,             # (H*dv, d_model), (1, d_model)
    g1_ref, be1_ref,            # MHA LayerNorm gamma/beta  (1, d_model)
    w1_ref, b1_ref,             # FFN Linear 1: (d_model, d_inner), (1, d_inner)
    w2_ref, b2_ref,             # FFN Linear 2: (d_inner, d_model), (1, d_model)
    g2_ref, be2_ref,            # FFN LayerNorm gamma/beta  (1, d_model)
    out_ref,                    # (S, d_model)
    attn_ref=None,              # (H, S, S)   -- only present for the last layer
    *, n_head, d_k, d_v, inv_temp, eps, prenorm,
):
    x = x_ref[...].astype(jnp.float32)
    residual = x
    xin = _layernorm_f32(x, g1_ref[...], be1_ref[...], eps) if prenorm else x

    # Fused Q|K|V projection: one lane-dense matmul, f32 accumulation.
    qkv = jnp.dot(xin, wqkv_ref[...], preferred_element_type=jnp.float32)
    qkv = qkv + bqkv_ref[...].astype(jnp.float32)

    hdk = n_head * d_k
    q_all = qkv[:, :hdk] * inv_temp          # fold 1/sqrt(d_k) into Q
    k_all = qkv[:, hdk:2 * hdk]
    v_all = qkv[:, 2 * hdk:]

    # Per-head attention: static unroll (n_head is small and compile-time).
    ctx_cols = []
    for h in range(n_head):
        qh = q_all[:, h * d_k:(h + 1) * d_k]
        kh = k_all[:, h * d_k:(h + 1) * d_k]
        vh = v_all[:, h * d_v:(h + 1) * d_v]
        # scores = (Q / temp) @ K^T  -- contract on the feature axis directly.
        s = jax.lax.dot_general(qh, kh, (((1,), (1,)), ((), ())),
                                preferred_element_type=jnp.float32)   # (S, S)
        # TODO(synk): optional neg_inf_mask add and the 'entmax' attention
        # activation (needs per-row sort) are not implemented; softmax only.
        m = jnp.max(s, axis=-1, keepdims=True)
        p = jnp.exp(s - m)
        p = p * pl.reciprocal(jnp.sum(p, axis=-1, keepdims=True), approx=True)
        if attn_ref is not None:
            attn_ref[h, :, :] = p.astype(attn_ref.dtype)
        ctx_cols.append(jnp.dot(p, vh, preferred_element_type=jnp.float32))
    ctx = jnp.concatenate(ctx_cols, axis=-1)       # (S, H*d_v)

    # Output projection + residual (+ post-norm).
    y = jnp.dot(ctx, wo_ref[...], preferred_element_type=jnp.float32)
    y = y + bo_ref[...].astype(jnp.float32) + residual
    if not prenorm:
        y = _layernorm_f32(y, g1_ref[...], be1_ref[...], eps)

    # Position-wise feed-forward + residual (+ post-norm).
    res2 = y
    yin = _layernorm_f32(y, g2_ref[...], be2_ref[...], eps) if prenorm else y
    h1 = jnp.dot(yin, w1_ref[...], preferred_element_type=jnp.float32)
    h1 = jnp.maximum(h1 + b1_ref[...].astype(jnp.float32), 0.0)        # ReLU
    z = jnp.dot(h1, w2_ref[...], preferred_element_type=jnp.float32)
    z = z + b2_ref[...].astype(jnp.float32) + res2
    if not prenorm:
        z = _layernorm_f32(z, g2_ref[...], be2_ref[...], eps)

    out_ref[...] = z.astype(out_ref.dtype)


# -------------------------------- wrappers ------------------------------------


def _full_spec(arr):
    """Whole-array block, same block for every grid step (stays VMEM-resident)."""
    nd = arr.ndim
    return pl.BlockSpec(arr.shape, lambda *_: (0,) * nd)


def add_norm_pallas(x, pe, gamma, beta, *, do_norm, do_add, eps):
    """(x [+ pe]) [+ LayerNorm], fused, one grid step per batch element."""
    B, S, D = x.shape
    kernel = functools.partial(_add_norm_kernel, eps=eps, do_norm=do_norm,
                               do_add=do_add)
    act_spec = pl.BlockSpec((None, S, D), lambda i: (i, 0, 0))
    if do_add:
        ins = (x, pe, gamma, beta)
        in_specs = [act_spec, act_spec, _full_spec(gamma), _full_spec(beta)]
    else:
        ins = (x, gamma, beta)
        in_specs = [act_spec, _full_spec(gamma), _full_spec(beta)]
    return pl.pallas_call(
        kernel,
        out_shape=jax.ShapeDtypeStruct((B, S, D), x.dtype),
        grid_spec=pltpu.PrefetchScalarGridSpec(
            num_scalar_prefetch=0,
            grid=(B,),
            in_specs=in_specs,
            out_specs=act_spec,
        ),
        compiler_params=pltpu.CompilerParams(dimension_semantics=("parallel",)),
    )(*ins)


def encoder_layer_pallas(x, lp, *, n_head, d_k, d_v, prenorm, eps,
                         return_attn):
    B, S, D = x.shape
    kernel = functools.partial(
        _encoder_layer_kernel,
        n_head=n_head, d_k=d_k, d_v=d_v,
        inv_temp=1.0 / math.sqrt(d_k), eps=eps, prenorm=prenorm,
    )
    ins = (lp["wqkv"], lp["bqkv"], lp["wo"], lp["bo"],
           lp["ln1_g"], lp["ln1_b"],
           lp["w1"], lp["b1"], lp["w2"], lp["b2"],
           lp["ln2_g"], lp["ln2_b"])

    act_spec = pl.BlockSpec((None, S, D), lambda i: (i, 0, 0))
    in_specs = [act_spec] + [_full_spec(a) for a in ins]

    if return_attn:
        out_shape = (jax.ShapeDtypeStruct((B, S, D), x.dtype),
                     jax.ShapeDtypeStruct((B, n_head, S, S), jnp.float32))
        out_specs = [act_spec,
                     pl.BlockSpec((None, n_head, S, S),
                                  lambda i: (i, 0, 0, 0))]
    else:
        out_shape = jax.ShapeDtypeStruct((B, S, D), x.dtype)
        out_specs = act_spec

    result = pl.pallas_call(
        kernel,
        out_shape=out_shape,
        grid_spec=pltpu.PrefetchScalarGridSpec(
            num_scalar_prefetch=0,
            grid=(B,),
            in_specs=in_specs,
            out_specs=out_specs,
        ),
        compiler_params=pltpu.CompilerParams(dimension_semantics=("parallel",)),
    )(x, *ins)

    if return_attn:
        return result[0], result[1]
    return result, None


def transformer_encoder_forward(x, pos_enc, params, *, n_head, d_k, d_v,
                                prenorm=False, eps=1e-6, mode="add"):
    """Matches TransformerEncoder.forward (dropout = identity, mask = None)."""
    # TODO(synk): mode='cat' (feature concat changes d_model) and attention
    # masks are not implemented; 'add' (default) only.
    enc = add_norm_pallas(x, pos_enc, params["ln_g"], params["ln_b"],
                          do_norm=not prenorm, do_add=True, eps=eps)
    attn = None
    n_layers = len(params["layers"])
    for li, lp in enumerate(params["layers"]):
        enc, a = encoder_layer_pallas(
            enc, lp, n_head=n_head, d_k=d_k, d_v=d_v, prenorm=prenorm,
            eps=eps, return_attn=(li == n_layers - 1))
        if a is not None:
            attn = a
    if prenorm:
        enc = add_norm_pallas(enc, None, params["ln_g"], params["ln_b"],
                              do_norm=True, do_add=False, eps=eps)
    return enc, attn


# -------------------------------- reference -----------------------------------


def reference_forward(x, pos_enc, params, *, n_head, d_k, d_v,
                      prenorm=False, eps=1e-6):
    def ln(y, g, b):
        mean = y.mean(-1, keepdims=True)
        var = ((y - mean) ** 2).mean(-1, keepdims=True)
        return (y - mean) / jnp.sqrt(var + eps) * g + b

    B, S, _ = x.shape
    hdk, hdv = n_head * d_k, n_head * d_v
    enc = x + pos_enc
    if not prenorm:
        enc = ln(enc, params["ln_g"], params["ln_b"])
    attn = None
    for p in params["layers"]:
        residual = enc
        xin = ln(enc, p["ln1_g"], p["ln1_b"]) if prenorm else enc
        qkv = xin @ p["wqkv"] + p["bqkv"]
        q = qkv[..., :hdk].reshape(B, S, n_head, d_k).transpose(0, 2, 1, 3)
        k = qkv[..., hdk:2 * hdk].reshape(B, S, n_head, d_k).transpose(0, 2, 1, 3)
        v = qkv[..., 2 * hdk:].reshape(B, S, n_head, d_v).transpose(0, 2, 1, 3)
        s = jnp.einsum("bhqd,bhkd->bhqk", q / math.sqrt(d_k), k)
        attn = jax.nn.softmax(s, axis=-1)
        o = jnp.einsum("bhqk,bhkd->bhqd", attn, v)
        o = o.transpose(0, 2, 1, 3).reshape(B, S, hdv)
        y = o @ p["wo"] + p["bo"] + residual
        if not prenorm:
            y = ln(y, p["ln1_g"], p["ln1_b"])
        res2 = y
        yin = ln(y, p["ln2_g"], p["ln2_b"]) if prenorm else y
        h = jnp.maximum(yin @ p["w1"] + p["b1"], 0.0)
        z = h @ p["w2"] + p["b2"] + res2
        if not prenorm:
            z = ln(z, p["ln2_g"], p["ln2_b"])
        enc = z
    if prenorm:
        enc = ln(enc, params["ln_g"], params["ln_b"])
    return enc, attn


# ---------------------------------- main --------------------------------------


def init_params(key, *, n_layers, d_model, d_inner, n_head, d_k, d_v):
    def dense(k, din, dout, scale=0.05):
        kw, kb = jax.random.split(k)
        return (jax.random.normal(kw, (din, dout), jnp.float32) * scale,
                jax.random.normal(kb, (1, dout), jnp.float32) * scale)

    def ln_params(k, d):
        kg, kb = jax.random.split(k)
        return (1.0 + 0.1 * jax.random.normal(kg, (1, d), jnp.float32),
                0.1 * jax.random.normal(kb, (1, d), jnp.float32))

    keys = jax.random.split(key, n_layers + 1)
    layers = []
    for lk in keys[:n_layers]:
        k1, k2, k3, k4, k5, k6, k7, k8 = jax.random.split(lk, 8)
        wq, bq = dense(k1, d_model, n_head * d_k)
        wk, bk = dense(k2, d_model, n_head * d_k)
        wv, bv = dense(k3, d_model, n_head * d_v)
        wo, bo = dense(k4, n_head * d_v, d_model)
        w1, b1 = dense(k5, d_model, d_inner)
        w2, b2 = dense(k6, d_inner, d_model)
        g1, be1 = ln_params(k7, d_model)
        g2, be2 = ln_params(k8, d_model)
        layers.append(dict(
            wqkv=jnp.concatenate([wq, wk, wv], axis=1),
            bqkv=jnp.concatenate([bq, bk, bv], axis=1),
            wo=wo, bo=bo, ln1_g=g1, ln1_b=be1,
            w1=w1, b1=b1, w2=w2, b2=b2, ln2_g=g2, ln2_b=be2,
        ))
    g, b = ln_params(keys[-1], d_model)
    return dict(layers=layers, ln_g=g, ln_b=b)


if __name__ == "__main__":
    # TransformerEncoder(n_layers=2, n_head=4, d_k=16, d_v=16, d_model=32,
    #                    d_inner=64, dropout=0.0)  -- small, self-consistent.
    n_layers, n_head, d_k, d_v = 2, 4, 16, 16
    d_model, d_inner = 32, 64
    B, S = 2, 8

    key = jax.random.PRNGKey(0)
    k_x, k_pe, k_p = jax.random.split(key, 3)
    x = jax.random.normal(k_x, (B, S, d_model), jnp.float32)
    pos_enc = 0.1 * jax.random.normal(k_pe, (B, S, d_model), jnp.float32)
    params = init_params(k_p, n_layers=n_layers, d_model=d_model,
                         d_inner=d_inner, n_head=n_head, d_k=d_k, d_v=d_v)

    out, attn = transformer_encoder_forward(
        x, pos_enc, params, n_head=n_head, d_k=d_k, d_v=d_v, prenorm=False)
    out = jax.block_until_ready(out)
    attn = jax.block_until_ready(attn)

    ref_out, ref_attn = reference_forward(
        x, pos_enc, params, n_head=n_head, d_k=d_k, d_v=d_v, prenorm=False)

    assert out.shape == (B, S, d_model)
    assert attn.shape == (B, n_head, S, S)
    # Tolerance accounts for the EUP approximate-reciprocal softmax divide.
    assert jnp.allclose(out, ref_out, atol=2e-3, rtol=2e-3), "output mismatch"
    assert jnp.allclose(attn, ref_attn, atol=2e-3, rtol=2e-3), "attn mismatch"

    print("KERNEL_OK")
</pallas_src>

<mosaic_0001>
module attributes {stable_mosaic.version = 11 : i64} {
  func.func @_add_norm_kernel(%arg0: i32, %arg1: memref<1x8x32xf32, #tpu.memory_space<vmem>>, %arg2: memref<1x8x32xf32, #tpu.memory_space<vmem>>, %arg3: memref<1x32xf32, #tpu.memory_space<vmem>>, %arg4: memref<1x32xf32, #tpu.memory_space<vmem>>, %arg5: memref<1x8x32xf32, #tpu.memory_space<vmem>>) attributes {dimension_semantics = [#tpu.dimension_semantics<parallel>], iteration_bounds = array<i64: 2>, scalar_prefetch = 0 : i64, scratch_operands = 0 : i64, tpu.core_type = #tpu.core_type<tc>, window_params = [{transform_indices = @transform_0, window_bounds = array<i64: 1, 8, 32>}, {transform_indices = @transform_1, window_bounds = array<i64: 1, 8, 32>}, {pipeline_mode = #tpu.pipeline_mode<synchronous>, transform_indices = @transform_2, window_bounds = array<i64: 1, 32>}, {pipeline_mode = #tpu.pipeline_mode<synchronous>, transform_indices = @transform_3, window_bounds = array<i64: 1, 32>}, {transform_indices = @transform_4, window_bounds = array<i64: 1, 8, 32>}]} {
    %c0 = arith.constant 0 : index
    %c0_0 = arith.constant 0 : index
    %c0_1 = arith.constant 0 : index
    %0 = vector.load %arg1[%c0, %c0_0, %c0_1] : memref<1x8x32xf32, #tpu.memory_space<vmem>>, vector<1x8x32xf32>
    %1 = vector.shape_cast %0 : vector<1x8x32xf32> to vector<8x32xf32>
    %c0_2 = arith.constant 0 : index
    %c0_3 = arith.constant 0 : index
    %c0_4 = arith.constant 0 : index
    %2 = vector.load %arg2[%c0_2, %c0_3, %c0_4] : memref<1x8x32xf32, #tpu.memory_space<vmem>>, vector<1x8x32xf32>
    %3 = vector.shape_cast %2 : vector<1x8x32xf32> to vector<8x32xf32>
    %4 = arith.addf %1, %3 : vector<8x32xf32>
    %c0_5 = arith.constant 0 : index
    %c0_6 = arith.constant 0 : index
    %5 = vector.load %arg3[%c0_5, %c0_6] : memref<1x32xf32, #tpu.memory_space<vmem>>, vector<1x32xf32>
    %c0_7 = arith.constant 0 : index
    %c0_8 = arith.constant 0 : index
    %6 = vector.load %arg4[%c0_7, %c0_8] : memref<1x32xf32, #tpu.memory_space<vmem>>, vector<1x32xf32>
    %cst = arith.constant dense<0.000000e+00> : vector<8xf32>
    %7 = vector.multi_reduction <add>, %4, %cst [1] : vector<8x32xf32> to vector<8xf32>
    %8 = vector.shape_cast %7 : vector<8xf32> to vector<8x1xf32>
    %cst_9 = arith.constant 3.200000e+01 : f32
    %9 = vector.broadcast %cst_9 : f32 to vector<8x1xf32>
    %10 = arith.divf %8, %9 : vector<8x1xf32>
    %11 = vector.broadcast %10 : vector<8x1xf32> to vector<8x32xf32>
    %12 = arith.subf %4, %11 : vector<8x32xf32>
    %13 = arith.mulf %12, %12 : vector<8x32xf32>
    %cst_10 = arith.constant dense<0.000000e+00> : vector<8xf32>
    %14 = vector.multi_reduction <add>, %13, %cst_10 [1] : vector<8x32xf32> to vector<8xf32>
    %15 = vector.shape_cast %14 : vector<8xf32> to vector<8x1xf32>
    %cst_11 = arith.constant 3.200000e+01 : f32
    %16 = vector.broadcast %cst_11 : f32 to vector<8x1xf32>
    %17 = arith.divf %15, %16 : vector<8x1xf32>
    %18 = vector.broadcast %10 : vector<8x1xf32> to vector<8x32xf32>
    %19 = arith.subf %4, %18 : vector<8x32xf32>
    %cst_12 = arith.constant 9.99999997E-7 : f32
    %20 = vector.broadcast %cst_12 : f32 to vector<8x1xf32>
    %21 = arith.addf %17, %20 : vector<8x1xf32>
    %22 = math.rsqrt %21 : vector<8x1xf32>
    %23 = vector.broadcast %22 : vector<8x1xf32> to vector<8x32xf32>
    %24 = arith.mulf %19, %23 : vector<8x32xf32>
    %25 = vector.broadcast %5 : vector<1x32xf32> to vector<8x32xf32>
    %26 = arith.mulf %24, %25 : vector<8x32xf32>
    %27 = vector.broadcast %6 : vector<1x32xf32> to vector<8x32xf32>
    %28 = arith.addf %26, %27 : vector<8x32xf32>
    %c0_13 = arith.constant 0 : index
    %c0_14 = arith.constant 0 : index
    %c0_15 = arith.constant 0 : index
    %29 = vector.load %arg5[%c0_13, %c0_14, %c0_15] : memref<1x8x32xf32, #tpu.memory_space<vmem>>, vector<1x8x32xf32>
    %30 = vector.shape_cast %29 : vector<1x8x32xf32> to vector<8x32xf32>
    %31 = vector.shape_cast %28 : vector<8x32xf32> to vector<1x8x32xf32>
    tpu.vector_store %arg5[%c0_13, %c0_14, %c0_15], %31 {strides = array<i32>} : memref<1x8x32xf32, #tpu.memory_space<vmem>>, vector<1x8x32xf32>,
    return
  }
  func.func @transform_0(%arg0: i32) -> (i32, i32, i32) {
    %c0_i32 = arith.constant 0 : i32
    %c0_i32_0 = arith.constant 0 : i32
    %c0_i32_1 = arith.constant 0 : i32
    return %arg0, %c0_i32, %c0_i32_0 : i32, i32, i32
  }
  func.func @transform_1(%arg0: i32) -> (i32, i32, i32) {
    %c0_i32 = arith.constant 0 : i32
    %c0_i32_0 = arith.constant 0 : i32
    %c0_i32_1 = arith.constant 0 : i32
    return %arg0, %c0_i32, %c0_i32_0 : i32, i32, i32
  }
  func.func @transform_2(%arg0: i32) -> (i32, i32) {
    %c0_i32 = arith.constant 0 : i32
    %c0_i32_0 = arith.constant 0 : i32
    %c0_i32_1 = arith.constant 0 : i32
    return %c0_i32, %c0_i32_0 : i32, i32
  }
  func.func @transform_3(%arg0: i32) -> (i32, i32) {
    %c0_i32 = arith.constant 0 : i32
    %c0_i32_0 = arith.constant 0 : i32
    %c0_i32_1 = arith.constant 0 : i32
    return %c0_i32, %c0_i32_0 : i32, i32
  }
  func.func @transform_4(%arg0: i32) -> (i32, i32, i32) {
    %c0_i32 = arith.constant 0 : i32
    %c0_i32_0 = arith.constant 0 : i32
    %c0_i32_1 = arith.constant 0 : i32
    return %arg0, %c0_i32, %c0_i32_0 : i32, i32, i32
  }
}

</mosaic_0001>

<llo_original>
// kernel: tpu_custom_call.1
$region0: #{tpu_custom_call.1}
  #allocation0 [shape = 'u32[]', space=smem, size = 0x4, offset = 0x4, fixed_abs, tag = 'smem constant byte address 0x4 - core index']
  #allocation1 [shape = 'u32[72,128]{1,0:T(1,128)}', space=vmem, size = 0x9000, scoped, tag = 'internal scratch']
  %s0 = inlined_call_operand.hbm [shape: f32[2,8,32], index: 0, kind: input, shape index: {}]
  %s1 = inlined_call_operand.hbm [shape: f32[2,8,32], index: 1, kind: input, shape index: {}]
  %s2 = inlined_call_operand.vmem [shape: f32[1,32], index: 2, kind: input, shape index: {}]
  %s3 = inlined_call_operand.vmem [shape: f32[1,32], index: 3, kind: input, shape index: {}]
  %s4 = inlined_call_operand.hbm [shape: f32[2,8,32], index: 4, kind: output, shape index: {}]
  %s5 = sld [smem:[#allocation0]]
  $region57: #{tpu_custom_call.1} parent=0
    _
  %s7 = ssub.s32 1, %s5
  %s8 = scalar_select 0, %s7, %s5
  $region1: #{tpu_custom_call.1} parent=0
    #allocation2 [shape = 'u8[8192]{0}', space=vmem, size = 0x2000, scoped, tag = 'input window, operand 0']
    #allocation3 [shape = 's32[2]{0}', space=sflag, size = 0x8, scoped, tag = 'scoped memory for tpu_custom_call.1']
    #allocation4 [shape = 's32[2]{0}', space=sflag, size = 0x8, scoped, tag = 'scoped memory for tpu_custom_call.1']
    #allocation5 [shape = 'u8[8192]{0}', space=vmem, size = 0x2000, scoped, tag = 'input window, operand 1']
    #allocation6 [shape = 's32[2]{0}', space=sflag, size = 0x8, scoped, tag = 'scoped memory for tpu_custom_call.1']
    #allocation7 [shape = 'u8[8192]{0}', space=vmem, size = 0x2000, scoped, tag = 'output window, operand 0']
    %9 = vsyncpa [#allocation3], 0
    %s10 = scalar_lea.sflag [#allocation3], 1
    %11 = vsyncpa %s10, 0
    %12 = vsyncpa [#allocation6], 0
    %s13 = scalar_lea.sflag [#allocation6], 1
    %14 = vsyncpa %s13, 0
    %15 = vsyncpa [#allocation4], 0
    %s16 = scalar_lea.sflag [#allocation4], 1
    %17 = vsyncpa %s16, 0
    loop: start=0, step=1, limit=4
    $region2: #{tpu_custom_call.1} parent=1 // loop_pre_header
      _
    $region3: #{tpu_custom_call.1} parent=1 // loop_header
      %s19 = sphi 0, %s23
      %p20 = scmp.ge.s32.totalorder %s19, 4
      %s29 = sphi 0, %s31
      %s32 = sphi 0, %s29
      %s33 = sphi 0, %s32
      %s49 = sphi 0, %s33
      %s55 = sphi 0, %s57
      %s58 = sphi 0, %s55
      %s59 = sphi 0, %s58
      %s75 = sphi 0, %s59
      %s79 = sphi 0, %s79
      %s81 = sphi 0, %s79
      %s82 = sphi 0, %s81
      %s96 = sphi 0, %s82
      %s100 = sphi 0, %s100
      %s102 = sphi 0, %s100
      %s103 = sphi 0, %s102
      %s117 = sphi 0, %s103
      %s123 = sphi 0, %s125
      %s126 = sphi 0, %s123
      %s127 = sphi 0, %s126
      %s143 = sphi 0, %s127
    $region4: #{tpu_custom_call.1} parent=1 // loop_header_branch
      %22 = sbr.rel (%p20) target = $region8
    $region5: #{tpu_custom_call.1} parent=1 // loop_body
      %s24 = ssub.s32 %s19, 1
      %s25 = ssub.s32 %s19, 2
      %s26 = sadd.s32 %s19, 1
      %s27 = ssub.s32 %s19, %s26
      %p28 = scmp.eq.s32.totalorder %s27, 0
      %s30 = sadd.s32 %s29, 1
      %s31 = scalar_select %p28, %s29, %s30
      %p34 = pneg %p28
      %p35 = scmp.eq.s32.totalorder %s19, 1
      %p36 = por %p34, %p35
      %p37 = scmp.ne.s32.totalorder %s29, %s32
      %p38 = scmp.eq.s32.totalorder %s19, 0
      %p39 = por %p37, %p38
      %p40 = scmp.ne.s32.totalorder %s29, %s32
      %p41 = scmp.eq.s32.totalorder %s24, 1
      %p42 = por %p40, %p41
      %p43 = scmp.ne.s32.totalorder %s32, %s33
      %p44 = scmp.eq.s32.totalorder %s24, 0
      %p45 = por %p43, %p44
      %p46 = scmp.ne.s32.totalorder %s32, %s33
      %p47 = scmp.eq.s32.totalorder %s25, 1
      %p48 = por %p46, %p47
      %p50 = scmp.ne.s32.totalorder %s33, %s49
      %p51 = scmp.eq.s32.totalorder %s25, 0
      %p52 = por %p50, %p51
      %s53 = ssub.s32 %s19, %s26
      %p54 = scmp.eq.s32.totalorder %s53, 0
      %s56 = sadd.s32 %s55, 1
      %s57 = scalar_select %p54, %s55, %s56
      %p60 = pneg %p54
      %p61 = scmp.eq.s32.totalorder %s19, 1
      %p62 = por %p60, %p61
      %p63 = scmp.ne.s32.totalorder %s55, %s58
      %p64 = scmp.eq.s32.totalorder %s19, 0
      %p65 = por %p63, %p64
      %p66 = scmp.ne.s32.totalorder %s55, %s58
      %p67 = scmp.eq.s32.totalorder %s24, 1
      %p68 = por %p66, %p67
      %p69 = scmp.ne.s32.totalorder %s58, %s59
      %p70 = scmp.eq.s32.totalorder %s24, 0
      %p71 = por %p69, %p70
      %p72 = scmp.ne.s32.totalorder %s58, %s59
      %p73 = scmp.eq.s32.totalorder %s25, 1
      %p74 = por %p72, %p73
      %p76 = scmp.ne.s32.totalorder %s59, %s75
      %p77 = scmp.eq.s32.totalorder %s25, 0
      %p78 = por %p76, %p77
      %s80 = sadd.s32 %s79, 1
      %p83 = scmp.eq.s32.totalorder %s19, 1
      %p84 = scmp.ne.s32.totalorder %s79, %s81
      %p85 = scmp.eq.s32.totalorder %s19, 0
      %p86 = por %p84, %p85
      %p87 = scmp.ne.s32.totalorder %s79, %s81
      %p88 = scmp.eq.s32.totalorder %s24, 1
      %p89 = por %p87, %p88
      %p90 = scmp.ne.s32.totalorder %s81, %s82
      %p91 = scmp.eq.s32.totalorder %s24, 0
      %p92 = por %p90, %p91
      %p93 = scmp.ne.s32.totalorder %s81, %s82
      %p94 = scmp.eq.s32.totalorder %s25, 1
      %p95 = por %p93, %p94
      %p97 = scmp.ne.s32.totalorder %s82, %s96
      %p98 = scmp.eq.s32.totalorder %s25, 0
      %p99 = por %p97, %p98
      %s101 = sadd.s32 %s100, 1
      %p104 = scmp.eq.s32.totalorder %s19, 1
      %p105 = scmp.ne.s32.totalorder %s100, %s102
      %p106 = scmp.eq.s32.totalorder %s19, 0
      %p107 = por %p105, %p106
      %p108 = scmp.ne.s32.totalorder %s100, %s102
      %p109 = scmp.eq.s32.totalorder %s24, 1
      %p110 = por %p108, %p109
      %p111 = scmp.ne.s32.totalorder %s102, %s103
      %p112 = scmp.eq.s32.totalorder %s24, 0
      %p113 = por %p111, %p112
      %p114 = scmp.ne.s32.totalorder %s102, %s103
      %p115 = scmp.eq.s32.totalorder %s25, 1
      %p116 = por %p114, %p115
      %p118 = scmp.ne.s32.totalorder %s103, %s117
      %p119 = scmp.eq.s32.totalorder %s25, 0
      %p120 = por %p118, %p119
      %s121 = ssub.s32 %s19, %s26
      %p122 = scmp.eq.s32.totalorder %s121, 0
      %s124 = sadd.s32 %s123, 1
      %s125 = scalar_select %p122, %s123, %s124
      %p128 = pneg %p122
      %p129 = scmp.eq.s32.totalorder %s19, 1
      %p130 = por %p128, %p129
      %p131 = scmp.ne.s32.totalorder %s123, %s126
      %p132 = scmp.eq.s32.totalorder %s19, 0
      %p133 = por %p131, %p132
      %p134 = scmp.ne.s32.totalorder %s123, %s126
      %p135 = scmp.eq.s32.totalorder %s24, 1
      %p136 = por %p134, %p135
      %p137 = scmp.ne.s32.totalorder %s126, %s127
      %p138 = scmp.eq.s32.totalorder %s24, 0
      %p139 = por %p137, %p138
      %p140 = scmp.ne.s32.totalorder %s126, %s127
      %p141 = scmp.eq.s32.totalorder %s25, 1
      %p142 = por %p140, %p141
      %p144 = scmp.ne.s32.totalorder %s127, %s143
      %p145 = scmp.eq.s32.totalorder %s25, 0
      %p146 = por %p144, %p145
      %p147 = scmp.le.s32.totalorder 1, %s19
      %p148 = scmp.lt.s32.totalorder %s19, 3
      %p149 = pnand %p147, %p148
      %p150 = pneg %p149
      // Predicated region
      $region9: #{tpu_custom_call.1} parent=5 // pred_check
        _
      $region10: #{tpu_custom_call.1} parent=5 // pred_check_branch
        %152 = sbr.rel (%p149) target = $region12
      $region11: #{tpu_custom_call.1} parent=5 // pred_region
        %s153 = ssub.s32 %s19, 1
        // Predicated region
        $region13: #{tpu_custom_call.1} parent=11 // pred_check
          %p154 = pneg %p92
        $region14: #{tpu_custom_call.1} parent=11 // pred_check_branch
          %156 = sbr.rel (%p154) target = $region16
        $region15: #{tpu_custom_call.1} parent=11 // pred_region
          _
        $region16: #{tpu_custom_call.1} parent=11 // pred_fallthru
          _
        // Predicated region
        $region17: #{tpu_custom_call.1} parent=11 // pred_check
          %p157 = pneg %p113
        $region18: #{tpu_custom_call.1} parent=11 // pred_check_branch
          %159 = sbr.rel (%p157) target = $region20
        $region19: #{tpu_custom_call.1} parent=11 // pred_region
          _
        $region20: #{tpu_custom_call.1} parent=11 // pred_fallthru
          _
      $region12: #{tpu_custom_call.1} parent=5 // pred_fallthru
        _
      %p160 = scmp.lt.s32.totalorder %s19, 2
      // Predicated region
      $region21: #{tpu_custom_call.1} parent=5 // pred_check
        %p161 = pneg %p160
      $region22: #{tpu_custom_call.1} parent=5 // pred_check_branch
        %163 = sbr.rel (%p161) target = $region24
      $region23: #{tpu_custom_call.1} parent=5 // pred_region
        // Predicated region
        $region25: #{tpu_custom_call.1} parent=23 // pred_check
          %p164 = pneg %p39
        $region26: #{tpu_custom_call.1} parent=23 // pred_check_branch
          %166 = sbr.rel (%p164) target = $region28
        $region27: #{tpu_custom_call.1} parent=23 // pred_region
          %s167 = sand.u32 %s29, 1
          %s168 = scalar_lea.sflag [#allocation3], %s167
          %s169 = sand.u32 %s29, 1
          %s170 = smul.addr %s169, 8
          %s171 = scalar_lea.vmem [#allocation2], %s170
          %173 = vsyncadd %s168, 0
          %s174 = smul.addr %s19, 8
          %s175 = scalar_lea.hbm %s0, %s174
          %s177 = sshll.u32 %s175, 4
          %s178 = int_to_ptr.hbm [resolvable:$true] %s177
          %s179 = sshll.u32 %s171, 4
          %s180 = int_to_ptr.vmem [resolvable:$true] %s179
          %182 = dma.hbm_to_vmem [thread:$0]  %s178, 128, %s180, %s168
        $region28: #{tpu_custom_call.1} parent=23 // pred_fallthru
          _
        // Predicated region
        $region29: #{tpu_custom_call.1} parent=23 // pred_check
          %p183 = pneg %p65
        $region30: #{tpu_custom_call.1} parent=23 // pred_check_branch
          %185 = sbr.rel (%p183) target = $region32
        $region31: #{tpu_custom_call.1} parent=23 // pred_region
          %s186 = sand.u32 %s55, 1
          %s187 = scalar_lea.sflag [#allocation6], %s186
          %s188 = sand.u32 %s55, 1
          %s189 = smul.addr %s188, 8
          %s190 = scalar_lea.vmem [#allocation5], %s189
          %192 = vsyncadd %s187, 0
          %s193 = smul.addr %s19, 8
          %s194 = scalar_lea.hbm %s1, %s193
          %s196 = sshll.u32 %s194, 4
          %s197 = int_to_ptr.hbm [resolvable:$true] %s196
          %s198 = sshll.u32 %s190, 4
          %s199 = int_to_ptr.vmem [resolvable:$true] %s198
          %201 = dma.hbm_to_vmem [thread:$0]  %s197, 128, %s199, %s187
        $region32: #{tpu_custom_call.1} parent=23 // pred_fallthru
          _
      $region24: #{tpu_custom_call.1} parent=5 // pred_fallthru
        _
      %p202 = scmp.le.s32.totalorder 1, %s19
      %p203 = scmp.lt.s32.totalorder %s19, 3
      %p204 = pnand %p202, %p203
      %p205 = pneg %p204
      // Predicated region
      $region33: #{tpu_custom_call.1} parent=5 // pred_check
        _
      $region34: #{tpu_custom_call.1} parent=5 // pred_check_branch
        %207 = sbr.rel (%p204) target = $region36
      $region35: #{tpu_custom_call.1} parent=5 // pred_region
        %s208 = ssub.s32 %s19, 1
        %s209 = sand.u32 %s32, 1
        %s210 = scalar_lea.sflag [#allocation3], %s209
        %s211 = sand.u32 %s32, 1
        %s212 = smul.addr %s211, 8
        %s213 = scalar_lea.vmem [#allocation2], %s212
        // Predicated region
        $region37: #{tpu_custom_call.1} parent=35 // pred_check
          %p214 = pneg %p45
        $region38: #{tpu_custom_call.1} parent=35 // pred_check_branch
          %216 = sbr.rel (%p214) target = $region40
        $region39: #{tpu_custom_call.1} parent=35 // pred_region
          %218 = dma.done %s210, 128
        $region40: #{tpu_custom_call.1} parent=35 // pred_fallthru
          _
        %s219 = sand.u32 %s58, 1
        %s220 = scalar_lea.sflag [#allocation6], %s219
        %s221 = sand.u32 %s58, 1
        %s222 = smul.addr %s221, 8
        %s223 = scalar_lea.vmem [#allocation5], %s222
        // Predicated region
        $region41: #{tpu_custom_call.1} parent=35 // pred_check
          %p224 = pneg %p71
        $region42: #{tpu_custom_call.1} parent=35 // pred_check_branch
          %226 = sbr.rel (%p224) target = $region44
        $region43: #{tpu_custom_call.1} parent=35 // pred_region
          %228 = dma.done %s220, 128
        $region44: #{tpu_custom_call.1} parent=35 // pred_fallthru
          _
        %s229 = sand.u32 %s32, 1
        %s230 = scalar_lea.sflag [#allocation3], %s229
        %s231 = sand.u32 %s32, 1
        %s232 = smul.addr %s231, 8
        %s233 = scalar_lea.vmem [#allocation2], %s232
        %p234 = pneg %p45
        %p235 = pneg %p42
        %s236 = sand.u32 %s58, 1
        %s237 = scalar_lea.sflag [#allocation6], %s236
        %s238 = sand.u32 %s58, 1
        %s239 = smul.addr %s238, 8
        %s240 = scalar_lea.vmem [#allocation5], %s239
        %p241 = pneg %p71
        %p242 = pneg %p68
        %p243 = pneg %p92
        %p244 = pneg %p89
        %p245 = pneg %p113
        %p246 = pneg %p110
        %p247 = pneg %p139
        %p248 = pneg %p136
        %s249 = sand.u32 %s126, 1
        %s250 = scalar_lea.sflag [#allocation4], %s249
        %s251 = sand.u32 %s126, 1
        %s252 = smul.addr %s251, 8
        %s253 = scalar_lea.vmem [#allocation7], %s252
        %v254 = vld [vmem:[%s213] sm:$0xff]
        %v255 = vld [vmem:[%s223] sm:$0xff]
        %v256 = vadd.f32 %v254, %v255
        %v257 = vld [vmem:[%s2] sm:$0x1]
        %v258 = vld [vmem:[%s3] sm:$0x1]
        %vm259 = vcmask 261120
        %v260 = vsel %vm259, %v256, 0.0
        %261 = vadd.xlane.f32.xlu0 %v260
        %v262 = vpop.xlane.xlu0 %261
        %v263 = vrcp.pop 32.0
        %v264 = vmul.f32 32.0, %v263
        %v265 = vsub.f32 1.0, %v264
        %v266 = vmul.f32 %v263, %v265
        %v267 = vadd.f32 %v263, %v266
        %vm268 = vweird.f32 %v263
        %v269 = vsel %vm268, %v263, %v267
        %v270 = vmul.f32 %v262, %v269
        %v271 = vsub.f32 %v256, %v270
        %v272 = vmul.f32 %v271, %v271
        %v273 = vsel %vm259, %v272, 0.0
        %274 = vadd.xlane.f32.xlu0 %v273
        %v275 = vpop.xlane.xlu0 %274
        %v276 = vmul.f32 %v275, %v269
        %v277 = vadd.f32 %v276, 1e-06
        %v278 = vrsqrt.pop %v277
        %v279 = vmul.f32 %v278, %v277
        %v280 = vmul.f32 %v279, %v278
        %v281 = vmul.f32 0.5, %v280
        %v282 = vsub.f32 1.5, %v281
        %v283 = vmul.f32 %v278, %v282
        %vm284 = vweird.f32 %v277
        %vm285 = vweird.f32 %v278
        %vm286 = vmor %vm284, %vm285
        %v287 = vsel %vm286, %v278, %v283
        %v288 = vmul.f32 %v271, %v287
        %v290 = vperm.slane %v257, 0
        %v292 = vmul.f32 %v288, %v290
        %v294 = vperm.slane %v258, 0
        %v296 = vadd.f32 %v292, %v294
        %297 = vst.msk [vmem:[%s253] sm:$0xff] %vm259, %v296
        %s298 = sand.u32 %s126, 1
        %s299 = scalar_lea.sflag [#allocation4], %s298
        %s300 = sand.u32 %s126, 1
        %s301 = smul.addr %s300, 8
        %s302 = scalar_lea.vmem [#allocation7], %s301
        // Predicated region
        $region45: #{tpu_custom_call.1} parent=35 // pred_check
          %p303 = pneg %p136
        $region46: #{tpu_custom_call.1} parent=35 // pred_check_branch
          %305 = sbr.rel (%p303) target = $region48
        $region47: #{tpu_custom_call.1} parent=35 // pred_region
          %307 = vsyncadd %s299, 0
          %s308 = smul.addr %s24, 8
          %s309 = scalar_lea.hbm %s4, %s308
          %s311 = sshll.u32 %s302, 4
          %s312 = int_to_ptr.vmem [resolvable:$true] %s311
          %s313 = sshll.u32 %s309, 4
          %s314 = int_to_ptr.hbm [resolvable:$true] %s313
          %316 = dma.vmem_to_hbm [thread:$0]  %s312, 128, %s314, %s299
        $region48: #{tpu_custom_call.1} parent=35 // pred_fallthru
          _
      $region36: #{tpu_custom_call.1} parent=5 // pred_fallthru
        _
      %p317 = scmp.le.s32.totalorder 2, %s19
      // Predicated region
      $region49: #{tpu_custom_call.1} parent=5 // pred_check
        %p318 = pneg %p317
      $region50: #{tpu_custom_call.1} parent=5 // pred_check_branch
        %320 = sbr.rel (%p318) target = $region52
      $region51: #{tpu_custom_call.1} parent=5 // pred_region
        %s321 = ssub.s32 %s19, 2
        // Predicated region
        $region53: #{tpu_custom_call.1} parent=51 // pred_check
          %p322 = pneg %p142
        $region54: #{tpu_custom_call.1} parent=51 // pred_check_branch
          %324 = sbr.rel (%p322) target = $region56
        $region55: #{tpu_custom_call.1} parent=51 // pred_region
          %s325 = sand.u32 %s127, 1
          %s326 = scalar_lea.sflag [#allocation4], %s325
          %s327 = sand.u32 %s127, 1
          %s328 = smul.addr %s327, 8
          %s329 = scalar_lea.vmem [#allocation7], %s328
          %331 = dma.done %s326, 128
        $region56: #{tpu_custom_call.1} parent=51 // pred_fallthru
          _
      $region52: #{tpu_custom_call.1} parent=5 // pred_fallthru
        _
    $region6: #{tpu_custom_call.1} parent=1 // loop_footer
      %s23 = sadd.s32 1, %s19
    $region7: #{tpu_custom_call.1} parent=1 // loop_footer_branch
      %18 = sbr.rel target = $region3
    $region8: #{tpu_custom_call.1} parent=1 // loop_exit
      _
    %332 = vsyncpa [#allocation3], 1
    %s333 = scalar_lea.sflag [#allocation3], 1
    %334 = vsyncpa %s333, 1
    %335 = vsyncpa [#allocation6], 1
    %s336 = scalar_lea.sflag [#allocation6], 1
    %337 = vsyncpa %s336, 1
    %338 = vsyncpa [#allocation4], 1
    %s339 = scalar_lea.sflag [#allocation4], 1
    %340 = vsyncpa %s339, 1

</llo_original>
